<compile_context>
chip_gen: v6e
topology: v6e:2x2x1
jax: 0.10.0
libtpu: 0.0.40
codegen_flags: <defaults>
</compile_context>

<pallas_src>
import functools

import jax
import jax.numpy as jnp
from jax import lax
from jax.experimental import pallas as pl
from jax.experimental.pallas import tpu as pltpu


def _round_up(n, m):
    return ((n + m - 1) // m) * m


def _cumprob_kernel(x_ref, w_ref, b_ref, mask_ref, out_ref, *, base_col):
    # One fused MXU matmul: hazard columns [0, T) and the base-hazard column
    # (index base_col) come out of the same (TB, C) x (C, TF) pass.
    z = jnp.dot(x_ref[...], w_ref[...], preferred_element_type=jnp.float32)
    z = z + b_ref[...]                                            # (TB, TF) f32

    # ReLU on every column except the base-hazard one (must stay linear).
    # Padding columns are exact zeros (zero weight + zero bias): relu(0) == 0.
    col = lax.broadcasted_iota(jnp.int32, (1, z.shape[-1]), 1)
    h = jnp.where(col == base_col, z, jnp.maximum(z, 0.0))        # (TB, TF)

    # Cumulative sum + base-hazard broadcast as a single MXU matmul against
    # the resident augmented upper-triangular mask:
    #   rows < base_col : mask[i, j] = 1 iff j >= i   (cumulative sum)
    #   row == base_col : all ones                     (adds base hazard)
    #   rows > base_col : zeros
    cum = jnp.dot(h.astype(mask_ref.dtype), mask_ref[...],
                  preferred_element_type=jnp.float32)             # (TB, Tp)
    out_ref[...] = cum.astype(out_ref.dtype)


def cumulative_probability_layer(x, hazard_w, hazard_b, base_w, base_b,
                                 *, batch_block=256,
                                 compute_dtype=jnp.bfloat16):
    """Cumulative probability layer.

    Args:
      x:        (B, C) float32 input features.
      hazard_w: (T, C) hazard_fc weight (nn.Linear convention).
      hazard_b: (T,)   hazard_fc bias.
      base_w:   (1, C) base_hazard_fc weight.
      base_b:   (1,)   base_hazard_fc bias.
      batch_block: target batch tile (rows per grid step).
      compute_dtype: dtype fed to the MXU (bf16 default; f32 for exactness).
                     Accumulation and the bias add are always f32.

    Returns:
      (B, T) float32 cumulative probabilities.
    """
    B, C = x.shape
    T = hazard_w.shape[0]
    f32 = jnp.float32

    # Lane-dense padded output width.  The base-hazard column reuses the
    # existing [T, Tp) padding when possible; only when T is a multiple of
    # 128 do we spill into one extra 128-lane block.
    Tp = _round_up(T, 128)
    if T < Tp:
        base_col = T
        TF = Tp
    else:
        base_col = Tp
        TF = Tp + 128

    # Batch tile: multiple of 8 sublanes; cap it so the parallel batch axis
    # has >= 2 grid steps when B allows it (both v7x TensorCores get work).
    # The ragged trailing tile (B % TB != 0) is masked by Pallas on store,
    # and garbage rows read from the OOB part of the last x tile only affect
    # output rows that are never written back.
    if B <= 8:
        TB = B                                  # full-extent block (exempt from 8-rule)
    else:
        half = _round_up(pl.cdiv(B, 2), 8)
        TB = min(_round_up(min(batch_block, B), 8), max(half, 8))
    nb = pl.cdiv(B, TB)

    # Fused weight (C, TF): cols [0, T) = hazard_fc^T, col base_col = base_hazard_fc.
    w_aug = jnp.zeros((C, TF), f32)
    w_aug = w_aug.at[:, :T].set(hazard_w.T.astype(f32))
    w_aug = w_aug.at[:, base_col].set(base_w.reshape(-1).astype(f32))
    w_aug = w_aug.astype(compute_dtype)

    # Fused bias (1, TF), kept f32 (added to the f32 accumulator).
    b_aug = jnp.zeros((1, TF), f32)
    b_aug = b_aug.at[0, :T].set(hazard_b.astype(f32))
    b_aug = b_aug.at[0, base_col].set(base_b.reshape(()).astype(f32))

    # Grid-invariant augmented upper-triangular mask, built ONCE here and kept
    # resident in VMEM (constant index_map => fetched a single time per core).
    row = jnp.arange(TF, dtype=jnp.int32)[:, None]
    col = jnp.arange(Tp, dtype=jnp.int32)[None, :]
    keep = ((row <= col) & (row < base_col)) | (row == base_col)
    mask_aug = keep.astype(compute_dtype)                          # (TF, Tp)

    xc = x.astype(compute_dtype)   # no-op when compute_dtype == x.dtype

    # VMEM budget estimate: resident weight/bias/mask + double-buffered x/out
    # tiles + f32 temporaries; raise the scoped limit (capped at v7x's 64 MiB).
    esz = jnp.dtype(compute_dtype).itemsize
    est = (C * TF * esz + TF * 4 + TF * Tp * esz
           + 2 * TB * C * esz + 2 * TB * Tp * 4 + 3 * TB * TF * 4)
    vmem_limit = int(min(64 << 20, max(32 << 20, 2 * est)))

    kernel = functools.partial(_cumprob_kernel, base_col=base_col)

    out = pl.pallas_call(
        kernel,
        out_shape=jax.ShapeDtypeStruct((B, Tp), jnp.float32),
        grid_spec=pltpu.PrefetchScalarGridSpec(
            num_scalar_prefetch=0,
            grid=(nb,),
            in_specs=[
                pl.BlockSpec((TB, C), lambda i: (i, 0)),    # streamed x tiles
                pl.BlockSpec((C, TF), lambda i: (0, 0)),    # resident fused weight
                pl.BlockSpec((1, TF), lambda i: (0, 0)),    # resident fused bias
                pl.BlockSpec((TF, Tp), lambda i: (0, 0)),   # resident mask
            ],
            out_specs=pl.BlockSpec((TB, Tp), lambda i: (i, 0)),
        ),
        compiler_params=pltpu.CompilerParams(
            dimension_semantics=("parallel",),              # shard batch tiles across TCs
            vmem_limit_bytes=vmem_limit,
        ),
    )(xc, w_aug, b_aug, mask_aug)

    return out[:, :T]


def _reference(x, hazard_w, hazard_b, base_w, base_b):
    """Pure-JAX replica of the PyTorch forward."""
    T = hazard_w.shape[0]
    h = jnp.maximum(x @ hazard_w.T + hazard_b, 0.0)
    base = x @ base_w.T + base_b                       # (B, 1)
    mask = jnp.triu(jnp.ones((T, T), dtype=x.dtype))   # tril(ones).T
    expanded = h[:, :, None] * mask[None, :, :]
    return expanded.sum(axis=1) + base


if __name__ == "__main__":
    key = jax.random.PRNGKey(0)
    B, C, T = 2, 32, 8   # batch, num_features, max_followup

    k_x, k_wh, k_bh, k_wb, k_bb = jax.random.split(key, 5)

    x = jax.random.normal(k_x, (B, C), dtype=jnp.float32)

    # PyTorch nn.Linear-style init scale 1/sqrt(C).
    scale = 1.0 / jnp.sqrt(jnp.float32(C))
    hazard_w = jax.random.uniform(k_wh, (T, C), jnp.float32, -scale, scale)
    hazard_b = jax.random.uniform(k_bh, (T,), jnp.float32, -scale, scale)
    base_w = jax.random.uniform(k_wb, (1, C), jnp.float32, -scale, scale)
    base_b = jax.random.uniform(k_bb, (1,), jnp.float32, -scale, scale)

    ref = _reference(x, hazard_w, hazard_b, base_w, base_b)

    # f32 path: numerically faithful to the PyTorch forward (strict check).
    out_f32 = cumulative_probability_layer(
        x, hazard_w, hazard_b, base_w, base_b, compute_dtype=jnp.float32)
    out_f32 = jax.block_until_ready(out_f32)
    assert out_f32.shape == (B, T), f"bad shape {out_f32.shape}"
    assert jnp.allclose(out_f32, ref, atol=1e-5, rtol=1e-5), "f32 mismatch vs reference"

    # Default bf16 MXU path (v6e/v7x throughput); loose tolerance expected.
    out_bf16 = cumulative_probability_layer(x, hazard_w, hazard_b, base_w, base_b)
    out_bf16 = jax.block_until_ready(out_bf16)
    assert out_bf16.shape == (B, T), f"bad shape {out_bf16.shape}"
    assert jnp.allclose(out_bf16, ref, atol=1e-1, rtol=1e-1), "bf16 mismatch vs reference"

    print("KERNEL_OK")
</pallas_src>

<mosaic_0001>
module attributes {stable_mosaic.version = 11 : i64} {
  func.func @_cumprob_kernel(%arg0: i32, %arg1: memref<2x32xf32, #tpu.memory_space<vmem>>, %arg2: memref<32x128xf32, #tpu.memory_space<vmem>>, %arg3: memref<1x128xf32, #tpu.memory_space<vmem>>, %arg4: memref<128x128xf32, #tpu.memory_space<vmem>>, %arg5: memref<2x128xf32, #tpu.memory_space<vmem>>) attributes {dimension_semantics = [#tpu.dimension_semantics<parallel>], iteration_bounds = array<i64: 1>, scalar_prefetch = 0 : i64, scratch_operands = 0 : i64, tpu.core_type = #tpu.core_type<tc>, window_params = [{transform_indices = @transform_0, window_bounds = array<i64: 2, 32>}, {pipeline_mode = #tpu.pipeline_mode<synchronous>, transform_indices = @transform_1, window_bounds = array<i64: 32, 128>}, {pipeline_mode = #tpu.pipeline_mode<synchronous>, transform_indices = @transform_2, window_bounds = array<i64: 1, 128>}, {pipeline_mode = #tpu.pipeline_mode<synchronous>, transform_indices = @transform_3, window_bounds = array<i64: 128, 128>}, {transform_indices = @transform_4, window_bounds = array<i64: 2, 128>}]} {
    %c0 = arith.constant 0 : index
    %c0_0 = arith.constant 0 : index
    %0 = vector.load %arg1[%c0, %c0_0] : memref<2x32xf32, #tpu.memory_space<vmem>>, vector<2x32xf32>
    %c0_1 = arith.constant 0 : index
    %c0_2 = arith.constant 0 : index
    %1 = vector.load %arg2[%c0_1, %c0_2] : memref<32x128xf32, #tpu.memory_space<vmem>>, vector<32x128xf32>
    %cst = arith.constant dense<0.000000e+00> : vector<2x128xf32>
    %2 = tpu.matmul %0, %1, %cst {dimension_numbers = #tpu.dot_dimension_numbers<[1], [0], [0], [1], [0, 0, 1, 1], [], []>} : vector<2x32xf32>, vector<32x128xf32>, vector<2x128xf32> -> vector<2x128xf32>
    %c0_3 = arith.constant 0 : index
    %c0_4 = arith.constant 0 : index
    %3 = vector.load %arg3[%c0_3, %c0_4] : memref<1x128xf32, #tpu.memory_space<vmem>>, vector<1x128xf32>
    %4 = vector.broadcast %3 : vector<1x128xf32> to vector<2x128xf32>
    %5 = arith.addf %2, %4 : vector<2x128xf32>
    %6 = tpu.iota {dimensions = array<i32: 1>} : vector<1x128xi32>
    %c8_i32 = arith.constant 8 : i32
    %7 = vector.broadcast %c8_i32 : i32 to vector<1x128xi32>
    %8 = arith.cmpi eq, %6, %7 : vector<1x128xi32>
    %cst_5 = arith.constant 0.000000e+00 : f32
    %9 = vector.broadcast %cst_5 : f32 to vector<2x128xf32>
    %10 = arith.maximumf %5, %9 : vector<2x128xf32>
    %11 = vector.shape_cast %8 : vector<1x128xi1> to vector<1x128xi1>
    %12 = vector.broadcast %11 : vector<1x128xi1> to vector<2x128xi1>
    %13 = arith.select %12, %5, %10 : vector<2x128xi1>, vector<2x128xf32>
    %c0_6 = arith.constant 0 : index
    %c0_7 = arith.constant 0 : index
    %14 = vector.load %arg4[%c0_6, %c0_7] : memref<128x128xf32, #tpu.memory_space<vmem>>, vector<128x128xf32>
    %cst_8 = arith.constant dense<0.000000e+00> : vector<2x128xf32>
    %15 = tpu.matmul %13, %14, %cst_8 {dimension_numbers = #tpu.dot_dimension_numbers<[1], [0], [0], [1], [0, 0, 1, 1], [], []>} : vector<2x128xf32>, vector<128x128xf32>, vector<2x128xf32> -> vector<2x128xf32>
    %c0_9 = arith.constant 0 : index
    %c0_10 = arith.constant 0 : index
    %16 = vector.load %arg5[%c0_9, %c0_10] : memref<2x128xf32, #tpu.memory_space<vmem>>, vector<2x128xf32>
    tpu.vector_store %arg5[%c0_9, %c0_10], %15 {strides = array<i32>} : memref<2x128xf32, #tpu.memory_space<vmem>>, vector<2x128xf32>,
    return
  }
  func.func @transform_0(%arg0: i32) -> (i32, i32) {
    %c0_i32 = arith.constant 0 : i32
    %c0_i32_0 = arith.constant 0 : i32
    return %arg0, %c0_i32 : i32, i32
  }
  func.func @transform_1(%arg0: i32) -> (i32, i32) {
    %c0_i32 = arith.constant 0 : i32
    %c0_i32_0 = arith.constant 0 : i32
    %c0_i32_1 = arith.constant 0 : i32
    return %c0_i32, %c0_i32_0 : i32, i32
  }
  func.func @transform_2(%arg0: i32) -> (i32, i32) {
    %c0_i32 = arith.constant 0 : i32
    %c0_i32_0 = arith.constant 0 : i32
    %c0_i32_1 = arith.constant 0 : i32
    return %c0_i32, %c0_i32_0 : i32, i32
  }
  func.func @transform_3(%arg0: i32) -> (i32, i32) {
    %c0_i32 = arith.constant 0 : i32
    %c0_i32_0 = arith.constant 0 : i32
    %c0_i32_1 = arith.constant 0 : i32
    return %c0_i32, %c0_i32_0 : i32, i32
  }
  func.func @transform_4(%arg0: i32) -> (i32, i32) {
    %c0_i32 = arith.constant 0 : i32
    %c0_i32_0 = arith.constant 0 : i32
    return %arg0, %c0_i32 : i32, i32
  }
}

</mosaic_0001>

<llo_original>
// kernel: tpu_custom_call.1
$region0: #{tpu_custom_call.1}
  #allocation0 [shape = 'u32[]', space=smem, size = 0x4, offset = 0x4, fixed_abs, tag = 'smem constant byte address 0x4 - core index']
  #allocation1 [shape = 'u32[144,128]{1,0:T(1,128)}', space=vmem, size = 0x12000, scoped, tag = 'internal scratch']
  %s0 = inlined_call_operand.hbm [shape: f32[2,32], index: 0, kind: input, shape index: {}]
  %s1 = inlined_call_operand.hbm [shape: f32[32,128], index: 1, kind: input, shape index: {}]
  %s2 = inlined_call_operand.vmem [shape: f32[1,128], index: 2, kind: input, shape index: {}]
  %s3 = inlined_call_operand.hbm [shape: f32[128,128], index: 3, kind: input, shape index: {}]
  %s4 = inlined_call_operand.hbm [shape: f32[2,128], index: 4, kind: output, shape index: {}]
  %s5 = sld [smem:[#allocation0]]
  $region38: #{tpu_custom_call.1} parent=0
    _
  %s7 = ssub.s32 1, %s5
  %s8 = scalar_select 0, %s7, %s5
  $region1: #{tpu_custom_call.1} parent=0
    #allocation2 [shape = 'u8[1024]{0}', space=vmem, size = 0x400, scoped, tag = 'input window, operand 0, single buffered']
    #allocation3 [shape = 's32[1]{0}', space=sflag, size = 0x4, scoped, tag = 'scoped memory for tpu_custom_call.1']
    #allocation4 [shape = 's32[1]{0}', space=sflag, size = 0x4, scoped, tag = 'scoped memory for tpu_custom_call.1']
    #allocation5 [shape = 'u8[16384]{0}', space=vmem, size = 0x4000, scoped, tag = 'input window, operand 1, single buffered']
    #allocation6 [shape = 's32[1]{0}', space=sflag, size = 0x4, scoped, tag = 'scoped memory for tpu_custom_call.1']
    #allocation7 [shape = 'u8[65536]{0}', space=vmem, size = 0x10000, scoped, tag = 'input window, operand 3, single buffered']
    #allocation8 [shape = 'u8[1024]{0}', space=vmem, size = 0x400, scoped, tag = 'output window, operand 0, single buffered']
    %9 = vsyncpa [#allocation3], 0
    %10 = vsyncpa [#allocation6], 0
    %11 = vsyncpa [#allocation4], 0
    // Predicated region
    $region2: #{tpu_custom_call.1} parent=1 // pred_check
      _
    $region3: #{tpu_custom_call.1} parent=1 // pred_check_branch
      %13 = sbr.rel (0) target = $region5
    $region4: #{tpu_custom_call.1} parent=1 // pred_region
      %s15 = ssub.s32 32, 32
      %16 = vsyncadd [#allocation3], %s15
      %s18 = sshll.u32 [#allocation2], 4
      %s19 = int_to_ptr.vmem [resolvable:$true] %s18
      %21 = dma.hbm_to_vmem [thread:$0]  %s0, 32, %s19, [#allocation3]
    $region5: #{tpu_custom_call.1} parent=1 // pred_fallthru
      _
    // Predicated region
    $region6: #{tpu_custom_call.1} parent=1 // pred_check
      _
    $region7: #{tpu_custom_call.1} parent=1 // pred_check_branch
      %23 = sbr.rel (0) target = $region9
    $region8: #{tpu_custom_call.1} parent=1 // pred_region
      %s25 = ssub.s32 512, 512
      %26 = vsyncadd [#allocation6], %s25
      %s27 = sshll.u32 [#allocation5], 4
      %s28 = int_to_ptr.vmem [resolvable:$true] %s27
      %33 = dma.hbm_to_vmem [thread:$0]  %s1, 512, %s28, [#allocation6], 128, 128, 8
    $region9: #{tpu_custom_call.1} parent=1 // pred_fallthru
      _
    // Predicated region
    $region10: #{tpu_custom_call.1} parent=1 // pred_check
      _
    $region11: #{tpu_custom_call.1} parent=1 // pred_check_branch
      %35 = sbr.rel (0) target = $region13
    $region12: #{tpu_custom_call.1} parent=1 // pred_region
      _
    $region13: #{tpu_custom_call.1} parent=1 // pred_fallthru
      _
    // Predicated region
    $region14: #{tpu_custom_call.1} parent=1 // pred_check
      _
    $region15: #{tpu_custom_call.1} parent=1 // pred_check_branch
      %37 = sbr.rel (0) target = $region17
    $region16: #{tpu_custom_call.1} parent=1 // pred_region
      %s39 = ssub.s32 2048, 2048
      %40 = vsyncadd [#allocation6], %s39
      %s41 = sshll.u32 [#allocation7], 4
      %s42 = int_to_ptr.vmem [resolvable:$true] %s41
      %47 = dma.hbm_to_vmem [thread:$0]  %s3, 2048, %s42, [#allocation6], 128, 128, 8
    $region17: #{tpu_custom_call.1} parent=1 // pred_fallthru
      _
    // Predicated region
    $region18: #{tpu_custom_call.1} parent=1 // pred_check
      _
    $region19: #{tpu_custom_call.1} parent=1 // pred_check_branch
      %49 = sbr.rel (0) target = $region21
    $region20: #{tpu_custom_call.1} parent=1 // pred_region
      %50 = dma.done [#allocation3], 32
    $region21: #{tpu_custom_call.1} parent=1 // pred_fallthru
      _
    // Predicated region
    $region22: #{tpu_custom_call.1} parent=1 // pred_check
      _
    $region23: #{tpu_custom_call.1} parent=1 // pred_check_branch
      %52 = sbr.rel (0) target = $region25
    $region24: #{tpu_custom_call.1} parent=1 // pred_region
      %53 = dma.done [#allocation6], 512
    $region25: #{tpu_custom_call.1} parent=1 // pred_fallthru
      _
    // Predicated region
    $region26: #{tpu_custom_call.1} parent=1 // pred_check
      _
    $region27: #{tpu_custom_call.1} parent=1 // pred_check_branch
      %55 = sbr.rel (0) target = $region29
    $region28: #{tpu_custom_call.1} parent=1 // pred_region
      %56 = dma.done [#allocation6], 2048
    $region29: #{tpu_custom_call.1} parent=1 // pred_fallthru
      _
    %v57 = vld [vmem:[#allocation2] sm:$0x3]
    %v58 = vld [vmem:[#allocation5] sm:$0xff]
    %v59 = vld [vmem:[#allocation5 + $0x8] sm:$0xff]
    %v60 = vld [vmem:[#allocation5 + $0x10] sm:$0xff]
    %v61 = vld [vmem:[#allocation5 + $0x18] sm:$0xff]
    %v62 = vld [vmem:[%s2] sm:$0x1]
    %v64 = vlaneseq
    %v65 = vshrl.u32 %v64, 7
    %v66 = vsub.s32 0, %v65
    %v67 = vrot.slane %v62, %v66
    %vm69 = vcmask 261120
    %v71 = vsel %vm69, %v57, 0
    %73 = vmatprep.subr.mxu0 0.0
    %74 = vmatpush1.msra.mxu0 0.0
    %75 = vmatprep.subr.mxu0 0.0
    %76 = vmatpush1.msra.mxu0 0.0
    %77 = vmatprep.subr.mxu0 0.0
    %78 = vmatpush1.msra.mxu0 0.0
    %79 = vmatprep.subr.mxu0 0.0
    %80 = vmatpush1.msra.mxu0 0.0
    %81 = vmatprep.subr.mxu0 0.0
    %82 = vmatpush1.msra.mxu0 0.0
    %83 = vmatprep.subr.mxu0 0.0
    %84 = vmatpush1.msra.mxu0 0.0
    %85 = vmatprep.subr.mxu0 0.0
    %86 = vmatpush1.msra.mxu0 0.0
    %87 = vmatprep.subr.mxu0 0.0
    %88 = vmatpush1.msra.mxu0 0.0
    %89 = vmatprep.subr.mxu0 0.0
    %90 = vmatpush1.msra.mxu0 0.0
    %91 = vmatprep.subr.mxu0 0.0
    %92 = vmatpush1.msra.mxu0 0.0
    %93 = vmatprep.subr.mxu0 0.0
    %94 = vmatpush1.msra.mxu0 0.0
    %95 = vmatprep.subr.mxu0 0.0
    %96 = vmatpush1.msra.mxu0 0.0
    %97 = vmatprep.subr.mxu0 0.0
    %98 = vmatpush1.msra.mxu0 %v61
    %99 = vmatprep.subr.mxu0 0.0
    %100 = vmatpush1.msra.mxu0 %v60
    %101 = vmatprep.subr.mxu0 0.0
    %102 = vmatpush1.msra.mxu0 %v59
    %103 = vmatprep.subr.mxu0 0.0
    %104 = vmatpush1.msra.mxu0 %v58
    %105 = vmatprep.subr.mxu0 0.0
    %106 = vmatpush2.msra.mxu0 0.0
    %107 = vmatprep.subr.mxu0 0.0
    %108 = vmatpush2.msra.mxu0 0.0
    %109 = vmatprep.subr.mxu0 0.0
    %110 = vmatpush2.msra.mxu0 0.0
    %111 = vmatprep.subr.mxu0 0.0
    %112 = vmatpush2.msra.mxu0 0.0
    %113 = vmatprep.subr.mxu0 0.0
    %114 = vmatpush2.msra.mxu0 0.0
    %115 = vmatprep.subr.mxu0 0.0
    %116 = vmatpush2.msra.mxu0 0.0
    %117 = vmatprep.subr.mxu0 0.0
    %118 = vmatpush2.msra.mxu0 0.0
    %119 = vmatprep.subr.mxu0 0.0
    %120 = vmatpush2.msra.mxu0 0.0
    %121 = vmatprep.subr.mxu0 0.0
    %122 = vmatpush2.msra.mxu0 0.0
    %123 = vmatprep.subr.mxu0 0.0
    %124 = vmatpush2.msra.mxu0 0.0
    %125 = vmatprep.subr.mxu0 0.0
    %126 = vmatpush2.msra.mxu0 0.0
    %127 = vmatprep.subr.mxu0 0.0
    %128 = vmatpush2.msra.mxu0 0.0
    %129 = vmatprep.subr.mxu0 0.0
    %130 = vmatpush2.msra.mxu0 0.0
    %131 = vmatprep.subr.mxu0 0.0
    %132 = vmatpush2.msra.mxu0 0.0
    %133 = vmatprep.subr.mxu0 0.0
    %134 = vmatpush2.msra.mxu0 0.0
    %135 = vmatprep.subr.mxu0 0.0
    %136 = vmatpush2.msra.mxu0 0.0
    %137 = vmatprep.mubr.f32.mxu0 0.0
    %138 = vmatmul.mubr.f32.gmra.mxu0 %v71
    %v139 = vpop.f32.mrf.mxu0
    %v140 = vadd.f32 %v67, %v139
    %v141 = vpop.f32.mrf.mxu0
    %142 = vdwg.mxu0
    %v143 = vlaneseq
    %v144 = vand.u32 %v143, 127
    %vm145 = vcmp.eq.s32.totalorder %v144, 8
    %v146 = vmax.f32 %v140, 0.0
    %v147 = vsel %vm145, 1, 0
    %vm148 = vcmp.eq.s32.totalorder %v147, 1
    %v149 = vsel %vm148, %v140, %v146
    %v150 = vld [vmem:[#allocation7] sm:$0xff]
    %v151 = vld [vmem:[#allocation7 + $0x8] sm:$0xff]
    %v152 = vld [vmem:[#allocation7 + $0x10] sm:$0xff]
    %v153 = vld [vmem:[#allocation7 + $0x18] sm:$0xff]
    %v154 = vld [vmem:[#allocation7 + $0x20] sm:$0xff]
    %v155 = vld [vmem:[#allocation7 + $0x28] sm:$0xff]
    %v156 = vld [vmem:[#allocation7 + $0x30] sm:$0xff]
    %v157 = vld [vmem:[#allocation7 + $0x38] sm:$0xff]
    %v158 = vld [vmem:[#allocation7 + $0x40] sm:$0xff]
    %v159 = vld [vmem:[#allocation7 + $0x48] sm:$0xff]
    %v160 = vld [vmem:[#allocation7 + $0x50] sm:$0xff]
    %v161 = vld [vmem:[#allocation7 + $0x58] sm:$0xff]
    %v162 = vld [vmem:[#allocation7 + $0x60] sm:$0xff]
    %v163 = vld [vmem:[#allocation7 + $0x68] sm:$0xff]
    %v164 = vld [vmem:[#allocation7 + $0x70] sm:$0xff]
    %v165 = vld [vmem:[#allocation7 + $0x78] sm:$0xff]
    %166 = vmatprep.subr.mxu0 0.0
    %167 = vmatpush1.msra.mxu0 %v165
    %168 = vmatprep.subr.mxu0 0.0
    %169 = vmatpush1.msra.mxu0 %v164
    %170 = vmatprep.subr.mxu0 0.0
    %171 = vmatpush1.msra.mxu0 %v163
    %172 = vmatprep.subr.mxu0 0.0
    %173 = vmatpush1.msra.mxu0 %v162
    %174 = vmatprep.subr.mxu0 0.0
    %175 = vmatpush1.msra.mxu0 %v161
    %176 = vmatprep.subr.mxu0 0.0
    %177 = vmatpush1.msra.mxu0 %v160
    %178 = vmatprep.subr.mxu0 0.0
    %179 = vmatpush1.msra.mxu0 %v159
    %180 = vmatprep.subr.mxu0 0.0
    %181 = vmatpush1.msra.mxu0 %v158
    %182 = vmatprep.subr.mxu0 0.0
    %183 = vmatpush1.msra.mxu0 %v157
    %184 = vmatprep.subr.mxu0 0.0
    %185 = vmatpush1.msra.mxu0 %v156
    %186 = vmatprep.subr.mxu0 0.0
    %187 = vmatpush1.msra.mxu0 %v155
    %188 = vmatprep.subr.mxu0 0.0
    %189 = vmatpush1.msra.mxu0 %v154
    %190 = vmatprep.subr.mxu0 0.0
    %191 = vmatpush1.msra.mxu0 %v153
    %192 = vmatprep.subr.mxu0 0.0
    %193 = vmatpush1.msra.mxu0 %v152
    %194 = vmatprep.subr.mxu0 0.0
    %195 = vmatpush1.msra.mxu0 %v151
    %196 = vmatprep.subr.mxu0 0.0
    %197 = vmatpush1.msra.mxu0 %v150
    %198 = vmatprep.subr.mxu0 0.0
    %199 = vmatpush2.msra.mxu0 0.0
    %200 = vmatprep.subr.mxu0 0.0
    %201 = vmatpush2.msra.mxu0 0.0
    %202 = vmatprep.subr.mxu0 0.0
    %203 = vmatpush2.msra.mxu0 0.0
    %204 = vmatprep.subr.mxu0 0.0
    %205 = vmatpush2.msra.mxu0 0.0
    %206 = vmatprep.subr.mxu0 0.0
    %207 = vmatpush2.msra.mxu0 0.0
    %208 = vmatprep.subr.mxu0 0.0
    %209 = vmatpush2.msra.mxu0 0.0
    %210 = vmatprep.subr.mxu0 0.0
    %211 = vmatpush2.msra.mxu0 0.0
    %212 = vmatprep.subr.mxu0 0.0
    %213 = vmatpush2.msra.mxu0 0.0
    %214 = vmatprep.subr.mxu0 0.0
    %215 = vmatpush2.msra.mxu0 0.0
    %216 = vmatprep.subr.mxu0 0.0
    %217 = vmatpush2.msra.mxu0 0.0
    %218 = vmatprep.subr.mxu0 0.0
    %219 = vmatpush2.msra.mxu0 0.0
    %220 = vmatprep.subr.mxu0 0.0
    %221 = vmatpush2.msra.mxu0 0.0
    %222 = vmatprep.subr.mxu0 0.0
    %223 = vmatpush2.msra.mxu0 0.0
    %224 = vmatprep.subr.mxu0 0.0
    %225 = vmatpush2.msra.mxu0 0.0
    %226 = vmatprep.subr.mxu0 0.0
    %227 = vmatpush2.msra.mxu0 0.0
    %228 = vmatprep.subr.mxu0 0.0
    %229 = vmatpush2.msra.mxu0 0.0
    %230 = vmatprep.mubr.f32.mxu0 0.0
    %231 = vmatmul.mubr.f32.gmra.mxu0 %v149
    %v232 = vpop.f32.mrf.mxu0
    %v233 = vadd.f32 0.0, %v232
    %v234 = vpop.f32.mrf.mxu0
    %235 = vdwg.mxu0
    %236 = vst [vmem:[#allocation8] sm:$0x3] %v233
    // Predicated region
    $region30: #{tpu_custom_call.1} parent=1 // pred_check
      _
    $region31: #{tpu_custom_call.1} parent=1 // pred_check_branch
      %238 = sbr.rel (0) target = $region33
    $region32: #{tpu_custom_call.1} parent=1 // pred_region
      %s240 = ssub.s32 32, 32
      %241 = vsyncadd [#allocation4], %s240
      %s243 = sshll.u32 [#allocation8], 4
      %s244 = int_to_ptr.vmem [resolvable:$true] %s243
      %246 = dma.vmem_to_hbm [thread:$0]  %s244, 32, %s4, [#allocation4]
    $region33: #{tpu_custom_call.1} parent=1 // pred_fallthru
      _
    // Predicated region
    $region34: #{tpu_custom_call.1} parent=1 // pred_check
      _
    $region35: #{tpu_custom_call.1} parent=1 // pred_check_branch
      %248 = sbr.rel (0) target = $region37
    $region36: #{tpu_custom_call.1} parent=1 // pred_region
      %249 = dma.done [#allocation4], 32
    $region37: #{tpu_custom_call.1} parent=1 // pred_fallthru
      _
    %250 = vsyncpa [#allocation3], 1
    %251 = vsyncpa [#allocation6], 1
    %252 = vsyncpa [#allocation4], 1

</llo_original>
